<compile_context>
chip_gen: v5e
topology: v5e:2x2
jax: 0.10.0
libtpu: 0.0.40
codegen_flags: <defaults>
</compile_context>

<pallas_src>
import jax
import jax.numpy as jnp
from jax.experimental import pallas as pl
from jax.experimental.pallas import tpu as pltpu


NEG_BIG = jnp.float32(-1e30)  # masks padded class columns inside log_softmax


def _round_up(v, m):
    return ((v + m - 1) // m) * m


def _vmem_limit(resident_bytes):
    """Explicit scoped-VMEM budget: 2x resident set + headroom, <= 48 MiB (safe on v7x's 64 MiB)."""
    return int(min(max(2 * resident_bytes + (8 << 20), 16 << 20), 48 << 20))


# ----------------------------------------------------------------------------- kernels
def project_kernel(x_ref, w_ref, o_ref):
    """P_tile = x_tile @ W   (low-precision operands, f32 accumulation)."""
    o_ref[...] = jnp.dot(
        x_ref[...], w_ref[...], preferred_element_type=jnp.float32
    ).astype(o_ref.dtype)


def _accumulate_agg(scale_ref, adj_ref, p_ref, acc_ref):
    """acc += (dequantized) adj_tile @ P_tile; add the self rows when k == row tile."""
    i = pl.program_id(0)
    k = pl.program_id(1)

    @pl.when(k == 0)
    def _init():
        acc_ref[...] = jnp.zeros_like(acc_ref)

    adj = adj_ref[...]
    if adj_ref.dtype != p_ref.dtype:          # int8 (or f32) stream -> matmul dtype in VMEM
        adj = adj.astype(p_ref.dtype)
    contrib = jnp.dot(adj, p_ref[...], preferred_element_type=jnp.float32)
    if adj_ref.dtype == jnp.int8:             # scalar dequant applied to the f32 contribution
        contrib = contrib * scale_ref[0]
    acc_ref[...] += contrib

    # "+ x" self term of GINConv(eps=0): those rows live in this very P k-tile (tk == tm).
    @pl.when(k == i)
    def _self():
        acc_ref[...] += p_ref[...].astype(jnp.float32)


def gin_agg_project_kernel(scale_ref, adj_ref, p_ref, b_ref, w_ref, o_ref, acc_ref):
    """P_next_tile = relu(P_self + A_tile @ P + b) @ W_next   (K-tiled accumulation)."""
    _accumulate_agg(scale_ref, adj_ref, p_ref, acc_ref)

    @pl.when(pl.program_id(1) == pl.num_programs(1) - 1)
    def _fin():
        h = jnp.maximum(acc_ref[...] + b_ref[...], 0.0)
        o_ref[...] = jnp.dot(
            h.astype(w_ref.dtype), w_ref[...], preferred_element_type=jnp.float32
        ).astype(o_ref.dtype)


def gin_agg_fc_logsoftmax_kernel(scale_ref, adj_ref, p_ref, b_ref, w_ref, b_fc_ref,
                                 o_ref, acc_ref):
    """out_tile = log_softmax(relu(P_self + A_tile @ P + b) @ W_fc + b_fc)."""
    _accumulate_agg(scale_ref, adj_ref, p_ref, acc_ref)

    @pl.when(pl.program_id(1) == pl.num_programs(1) - 1)
    def _fin():
        h = jnp.maximum(acc_ref[...] + b_ref[...], 0.0)
        logits = jnp.dot(
            h.astype(w_ref.dtype), w_ref[...], preferred_element_type=jnp.float32
        ) + b_fc_ref[...]
        m = jnp.max(logits, axis=-1, keepdims=True)
        shifted = logits - m
        lse = jnp.log(jnp.sum(jnp.exp(shifted), axis=-1, keepdims=True))
        o_ref[...] = shifted - lse


# ---------------------------------------------------------------------------- wrappers
def _project(x, w, *, tm):
    n, f = x.shape
    hp = w.shape[1]
    resident = (2 * tm * f * x.dtype.itemsize        # streamed x row tiles (double-buffered)
                + f * hp * w.dtype.itemsize          # weight, single-buffered
                + 2 * tm * hp * x.dtype.itemsize)    # output tiles
    return pl.pallas_call(
        project_kernel,
        out_shape=jax.ShapeDtypeStruct((n, hp), x.dtype),
        grid=(n // tm,),
        in_specs=[
            pl.BlockSpec((tm, f), lambda i: (i, 0)),
            pl.BlockSpec((f, hp), lambda i: (0, 0), pipeline_mode=pl.Buffered(1)),
        ],
        out_specs=pl.BlockSpec((tm, hp), lambda i: (i, 0)),
        compiler_params=pltpu.CompilerParams(
            dimension_semantics=("parallel",),
            vmem_limit_bytes=_vmem_limit(resident)),
    )(x, w)


def _agg_resident_bytes(tm, hp, out_w, adj_itemsize, mm_itemsize, out_itemsize):
    return (2 * tm * tm * adj_itemsize     # adj tiles, double-buffered stream
            + 2 * tm * hp * mm_itemsize    # P k-tiles, double-buffered stream
            + hp * out_w * mm_itemsize     # weight, single-buffered
            + hp * 4 + out_w * 4           # biases
            + tm * hp * 4                  # f32 accumulator scratch
            + 2 * tm * out_w * out_itemsize)


def _gin_layer_project(scale, adj, p, b, w_next, *, tm):
    n = adj.shape[0]
    hp = p.shape[1]
    hnext = w_next.shape[1]
    nt = n // tm
    resident = _agg_resident_bytes(tm, hp, hnext, adj.dtype.itemsize,
                                   p.dtype.itemsize, p.dtype.itemsize)
    return pl.pallas_call(
        gin_agg_project_kernel,
        out_shape=jax.ShapeDtypeStruct((n, hnext), p.dtype),
        grid=(nt, nt),                                       # (row tiles, k tiles); k last
        in_specs=[
            pl.BlockSpec(memory_space=pltpu.MemorySpace.SMEM),               # dequant scale
            pl.BlockSpec((tm, tm), lambda i, k: (i, k)),                     # adj tile
            pl.BlockSpec((tm, hp), lambda i, k: (k, 0)),                     # P k-tile (self rows @ k==i)
            pl.BlockSpec((1, hp), lambda i, k: (0, 0), pipeline_mode=pl.Buffered(1)),
            pl.BlockSpec((hp, hnext), lambda i, k: (0, 0), pipeline_mode=pl.Buffered(1)),
        ],
        out_specs=pl.BlockSpec((tm, hnext), lambda i, k: (i, 0)),
        scratch_shapes=[pltpu.VMEM((tm, hp), jnp.float32)],
        compiler_params=pltpu.CompilerParams(
            dimension_semantics=("parallel", "arbitrary"),
            vmem_limit_bytes=_vmem_limit(resident)),
    )(scale, adj, p, b, w_next)


def _gin_layer_fc_logsoftmax(scale, adj, p, b, w_fc, b_fc, *, tm):
    n = adj.shape[0]
    hp = p.shape[1]
    cp = w_fc.shape[1]
    nt = n // tm
    resident = _agg_resident_bytes(tm, hp, cp, adj.dtype.itemsize, p.dtype.itemsize, 4)
    return pl.pallas_call(
        gin_agg_fc_logsoftmax_kernel,
        out_shape=jax.ShapeDtypeStruct((n, cp), jnp.float32),
        grid=(nt, nt),
        in_specs=[
            pl.BlockSpec(memory_space=pltpu.MemorySpace.SMEM),
            pl.BlockSpec((tm, tm), lambda i, k: (i, k)),
            pl.BlockSpec((tm, hp), lambda i, k: (k, 0)),
            pl.BlockSpec((1, hp), lambda i, k: (0, 0), pipeline_mode=pl.Buffered(1)),
            pl.BlockSpec((hp, cp), lambda i, k: (0, 0), pipeline_mode=pl.Buffered(1)),
            pl.BlockSpec((1, cp), lambda i, k: (0, 0), pipeline_mode=pl.Buffered(1)),
        ],
        out_specs=pl.BlockSpec((tm, cp), lambda i, k: (i, 0)),
        scratch_shapes=[pltpu.VMEM((tm, hp), jnp.float32)],
        compiler_params=pltpu.CompilerParams(
            dimension_semantics=("parallel", "arbitrary"),
            vmem_limit_bytes=_vmem_limit(resident)),
    )(scale, adj, p, b, w_fc, b_fc)


def gin_forward(x, adj, params, *, tm=256, use_bf16=True, adj_int8=False):
    """Eval-mode GIN forward.  x: [N, F] node features, adj: [N, N] dense weighted adjacency."""
    n, f = x.shape
    h = params["w1"].shape[1]
    c = params["w3"].shape[1]

    n_pad = _round_up(n, tm)
    h_pad = _round_up(h, 128)
    c_pad = _round_up(c, 128)

    mm_dtype = jnp.bfloat16 if use_bf16 else jnp.float32

    # Pad + cast once in the wrapper (lane-dense hidden/class dims, tile-multiple rows).
    x_p = jnp.zeros((n_pad, f), mm_dtype).at[:n, :].set(x.astype(mm_dtype))

    if adj_int8:
        # int8 adjacency + scalar dequant scale: halves the HBM bytes of the streamed,
        # bandwidth-dominant operand (v5e/v6e).  Padded entries stay exactly zero.
        amax = jnp.maximum(jnp.max(jnp.abs(adj)), 1e-30).astype(jnp.float32)
        scale = amax / 127.0
        adj_q = jnp.clip(jnp.round(adj / scale), -127, 127).astype(jnp.int8)
        adj_p = jnp.zeros((n_pad, n_pad), jnp.int8).at[:n, :n].set(adj_q)
        scale_arr = scale.reshape((1,))
    else:
        adj_p = jnp.zeros((n_pad, n_pad), mm_dtype).at[:n, :n].set(adj.astype(mm_dtype))
        scale_arr = jnp.ones((1,), jnp.float32)

    w1 = jnp.zeros((f, h_pad), mm_dtype).at[:, :h].set(params["w1"].astype(mm_dtype))
    w2 = jnp.zeros((h_pad, h_pad), mm_dtype).at[:h, :h].set(params["w2"].astype(mm_dtype))
    w3 = jnp.zeros((h_pad, c_pad), mm_dtype).at[:h, :c].set(params["w3"].astype(mm_dtype))
    b1 = jnp.zeros((1, h_pad), jnp.float32).at[:, :h].set(params["b1"])
    b2 = jnp.zeros((1, h_pad), jnp.float32).at[:, :h].set(params["b2"])
    b3 = jnp.full((1, c_pad), NEG_BIG, jnp.float32).at[:, :c].set(params["b3"])

    p1 = _project(x_p, w1, tm=tm)                                        # x @ W1           -> [Np, Hp]
    p2 = _gin_layer_project(scale_arr, adj_p, p1, b1, w2, tm=tm)         # relu(layer1)@W2  -> [Np, Hp]
    out = _gin_layer_fc_logsoftmax(scale_arr, adj_p, p2, b2, w3, b3, tm=tm)
    return out[:n, :c]


# --------------------------------------------------------------------------- references
def gin_forward_ref_f32(x, adj, params):
    """Semantic reference: original association, all-f32 (matches the PyTorch module)."""
    h1 = jnp.maximum((x + adj @ x) @ params["w1"] + params["b1"], 0.0)
    h2 = jnp.maximum((h1 + adj @ h1) @ params["w2"] + params["b2"], 0.0)
    logits = h2 @ params["w3"] + params["b3"]
    return jax.nn.log_softmax(logits, axis=1)


def gin_forward_ref_matched(x, adj, params):
    """Reference mirroring the kernel: bf16 operands, f32 accumulation, reassociated math."""
    bf = jnp.bfloat16
    xb, adjb = x.astype(bf), adj.astype(bf)
    w1b, w2b, w3b = (params[k].astype(bf) for k in ("w1", "w2", "w3"))
    p1 = jnp.dot(xb, w1b, preferred_element_type=jnp.float32).astype(bf)
    h1 = jnp.maximum(
        p1.astype(jnp.float32)
        + jnp.dot(adjb, p1, preferred_element_type=jnp.float32) + params["b1"], 0.0)
    p2 = jnp.dot(h1.astype(bf), w2b, preferred_element_type=jnp.float32).astype(bf)
    h2 = jnp.maximum(
        p2.astype(jnp.float32)
        + jnp.dot(adjb, p2, preferred_element_type=jnp.float32) + params["b2"], 0.0)
    logits = jnp.dot(h2.astype(bf), w3b, preferred_element_type=jnp.float32) + params["b3"]
    return jax.nn.log_softmax(logits, axis=1)


def init_params(key, nfeat, nhid, nclass):
    ks = jax.random.split(key, 6)

    def lin(kw, kb, fan_in, fan_out):
        bound = 1.0 / jnp.sqrt(fan_in)
        w = jax.random.uniform(kw, (fan_in, fan_out), jnp.float32, -bound, bound)
        b = jax.random.uniform(kb, (1, fan_out), jnp.float32, -bound, bound)
        return w, b

    w1, b1 = lin(ks[0], ks[1], nfeat, nhid)   # gc1.nn Linear(nfeat, nhid)
    w2, b2 = lin(ks[2], ks[3], nhid, nhid)    # gc2.nn Linear(nhid, nhid)
    w3, b3 = lin(ks[4], ks[5], nhid, nclass)  # fc2 Linear(nhid, nclass)
    return {"w1": w1, "b1": b1, "w2": w2, "b2": b2, "w3": w3, "b3": b3}


if __name__ == "__main__":
    # N deliberately NOT a multiple of the row tile to exercise padding; small shapes.
    N, NFEAT, NHID, NCLASS = 300, 64, 32, 8
    key = jax.random.PRNGKey(0)
    k_x, k_adj_m, k_adj_w, k_p = jax.random.split(key, 4)

    x = jax.random.normal(k_x, (N, NFEAT), jnp.float32)

    # sparse-ish weighted adjacency, materialized dense, plus self-loops (add_loop_sparse: A + I)
    mask = (jax.random.uniform(k_adj_m, (N, N)) < 0.05).astype(jnp.float32)
    weights = jax.random.uniform(k_adj_w, (N, N), jnp.float32)
    adj = mask * weights + jnp.eye(N, dtype=jnp.float32)

    params = init_params(k_p, NFEAT, NHID, NCLASS)

    # bf16 path, tm=128 -> 3x3 (row, k) grid: exercises the K-tiled accumulator,
    # the k==i self-add, the finalize step, and the ragged/padded last tile.
    out = jax.block_until_ready(gin_forward(x, adj, params, tm=128))
    assert out.shape == (N, NCLASS)
    assert bool(jnp.all(jnp.isfinite(out)))

    # Tight check vs a plain-JAX reference mirroring the kernel's bf16-operand /
    # f32-accumulation / reassociated math (only summation order differs).
    ref_matched = gin_forward_ref_matched(x, adj, params)
    assert jnp.allclose(out, ref_matched, atol=2e-3, rtol=2e-3), "mismatch vs bf16-matched reference"

    # Loose check vs the all-f32 semantic reference (difference = bf16 operand rounding only).
    ref_f32 = gin_forward_ref_f32(x, adj, params)
    assert jnp.allclose(out, ref_f32, atol=1e-1, rtol=1e-1), "mismatch vs f32 reference"

    # int8-adjacency path at the default tm=256 (2x2 grid): sanity check vs the bf16 result.
    out_q = jax.block_until_ready(gin_forward(x, adj, params, tm=256, adj_int8=True))
    assert out_q.shape == (N, NCLASS)
    assert bool(jnp.all(jnp.isfinite(out_q)))
    assert jnp.allclose(out_q, out, atol=2e-1, rtol=2e-1), "int8-adj path diverged"

    print("KERNEL_OK")
</pallas_src>

<mosaic_0001>
module attributes {stable_mosaic.version = 11 : i64} {
  func.func @project_kernel(%arg0: i32, %arg1: memref<128x64xbf16, #tpu.memory_space<vmem>>, %arg2: memref<64x128xbf16, #tpu.memory_space<vmem>>, %arg3: memref<128x128xbf16, #tpu.memory_space<vmem>>) attributes {dimension_semantics = [#tpu.dimension_semantics<parallel>], iteration_bounds = array<i64: 3>, scalar_prefetch = 0 : i64, scratch_operands = 0 : i64, tpu.core_type = #tpu.core_type<tc>, window_params = [{transform_indices = @transform_0, window_bounds = array<i64: 128, 64>}, {pipeline_mode = #tpu.pipeline_mode<synchronous>, transform_indices = @transform_1, window_bounds = array<i64: 64, 128>}, {transform_indices = @transform_2, window_bounds = array<i64: 128, 128>}]} {
    %c0 = arith.constant 0 : index
    %c0_0 = arith.constant 0 : index
    %0 = vector.load %arg1[%c0, %c0_0] : memref<128x64xbf16, #tpu.memory_space<vmem>>, vector<128x64xbf16>
    %c0_1 = arith.constant 0 : index
    %c0_2 = arith.constant 0 : index
    %1 = vector.load %arg2[%c0_1, %c0_2] : memref<64x128xbf16, #tpu.memory_space<vmem>>, vector<64x128xbf16>
    %cst = arith.constant dense<0.000000e+00> : vector<128x128xf32>
    %2 = tpu.matmul %0, %1, %cst {dimension_numbers = #tpu.dot_dimension_numbers<[1], [0], [0], [1], [0, 0, 1, 1], [], []>} : vector<128x64xbf16>, vector<64x128xbf16>, vector<128x128xf32> -> vector<128x128xf32>
    %3 = arith.truncf %2 : vector<128x128xf32> to vector<128x128xbf16>
    %c0_3 = arith.constant 0 : index
    %c0_4 = arith.constant 0 : index
    %4 = vector.load %arg3[%c0_3, %c0_4] : memref<128x128xbf16, #tpu.memory_space<vmem>>, vector<128x128xbf16>
    tpu.vector_store %arg3[%c0_3, %c0_4], %3 {strides = array<i32>} : memref<128x128xbf16, #tpu.memory_space<vmem>>, vector<128x128xbf16>,
    return
  }
  func.func @transform_0(%arg0: i32) -> (i32, i32) {
    %c0_i32 = arith.constant 0 : i32
    %c0_i32_0 = arith.constant 0 : i32
    return %arg0, %c0_i32 : i32, i32
  }
  func.func @transform_1(%arg0: i32) -> (i32, i32) {
    %c0_i32 = arith.constant 0 : i32
    %c0_i32_0 = arith.constant 0 : i32
    %c0_i32_1 = arith.constant 0 : i32
    return %c0_i32, %c0_i32_0 : i32, i32
  }
  func.func @transform_2(%arg0: i32) -> (i32, i32) {
    %c0_i32 = arith.constant 0 : i32
    %c0_i32_0 = arith.constant 0 : i32
    return %arg0, %c0_i32 : i32, i32
  }
}

</mosaic_0001>

<llo_original>
// kernel: tpu_custom_call.1
$region0: #{tpu_custom_call.1}
  #allocation0 [shape = 'u32[]', space=smem, size = 0x4, offset = 0x4, fixed_abs, tag = 'smem constant byte address 0x4 - core index']
  #allocation1 [shape = 'u32[72,128]{1,0:T(1,128)}', space=vmem, size = 0x9000, scoped, tag = 'internal scratch']
  %s0 = inlined_call_operand.vmem [shape: bf16[384,64], index: 0, kind: input, shape index: {}]
  %s1 = inlined_call_operand.vmem [shape: bf16[64,128], index: 1, kind: input, shape index: {}]
  %s2 = inlined_call_operand.hbm [shape: bf16[384,128], index: 2, kind: output, shape index: {}]
  %s3 = sld [smem:[#allocation0]]
  $region41: #{tpu_custom_call.1} parent=0
    _
  %s5 = ssub.s32 1, %s3
  %s6 = scalar_select 0, %s5, %s3
  $region1: #{tpu_custom_call.1} parent=0
    #allocation2 [shape = 'u8[65536]{0}', space=vmem, size = 0x10000, scoped, tag = 'output window, operand 0']
    #allocation3 [shape = 's32[2]{0}', space=sflag, size = 0x8, scoped, tag = 'scoped memory for tpu_custom_call.1']
    %7 = vsyncpa [#allocation3], 0
    %s8 = scalar_lea.sflag [#allocation3], 1
    %9 = vsyncpa %s8, 0
    loop: start=0, step=1, limit=5
    $region2: #{tpu_custom_call.1} parent=1 // loop_pre_header
      _
    $region3: #{tpu_custom_call.1} parent=1 // loop_header
      %s11 = sphi 0, %s15
      %p12 = scmp.ge.s32.totalorder %s11, 5
      %s21 = sphi 0, %s23
      %s24 = sphi 0, %s21
      %s25 = sphi 0, %s24
      %s41 = sphi 0, %s25
      %s45 = sphi 0, %s45
      %s47 = sphi 0, %s45
      %s48 = sphi 0, %s47
      %s62 = sphi 0, %s48
      %s68 = sphi 0, %s70
      %s71 = sphi 0, %s68
      %s72 = sphi 0, %s71
      %s88 = sphi 0, %s72
    $region4: #{tpu_custom_call.1} parent=1 // loop_header_branch
      %14 = sbr.rel (%p12) target = $region8
    $region5: #{tpu_custom_call.1} parent=1 // loop_body
      %s16 = ssub.s32 %s11, 1
      %s17 = ssub.s32 %s11, 2
      %s18 = sadd.s32 %s11, 1
      %s19 = ssub.s32 %s11, %s18
      %p20 = scmp.eq.s32.totalorder %s19, 0
      %s22 = sadd.s32 %s21, 1
      %s23 = scalar_select %p20, %s21, %s22
      %p26 = pneg %p20
      %p27 = scmp.eq.s32.totalorder %s11, 2
      %p28 = por %p26, %p27
      %p29 = scmp.ne.s32.totalorder %s21, %s24
      %p30 = scmp.eq.s32.totalorder %s11, 0
      %p31 = por %p29, %p30
      %p32 = scmp.ne.s32.totalorder %s21, %s24
      %p33 = scmp.eq.s32.totalorder %s16, 2
      %p34 = por %p32, %p33
      %p35 = scmp.ne.s32.totalorder %s24, %s25
      %p36 = scmp.eq.s32.totalorder %s16, 0
      %p37 = por %p35, %p36
      %p38 = scmp.ne.s32.totalorder %s24, %s25
      %p39 = scmp.eq.s32.totalorder %s17, 2
      %p40 = por %p38, %p39
      %p42 = scmp.ne.s32.totalorder %s25, %s41
      %p43 = scmp.eq.s32.totalorder %s17, 0
      %p44 = por %p42, %p43
      %s46 = sadd.s32 %s45, 1
      %p49 = scmp.eq.s32.totalorder %s11, 2
      %p50 = scmp.ne.s32.totalorder %s45, %s47
      %p51 = scmp.eq.s32.totalorder %s11, 0
      %p52 = por %p50, %p51
      %p53 = scmp.ne.s32.totalorder %s45, %s47
      %p54 = scmp.eq.s32.totalorder %s16, 2
      %p55 = por %p53, %p54
      %p56 = scmp.ne.s32.totalorder %s47, %s48
      %p57 = scmp.eq.s32.totalorder %s16, 0
      %p58 = por %p56, %p57
      %p59 = scmp.ne.s32.totalorder %s47, %s48
      %p60 = scmp.eq.s32.totalorder %s17, 2
      %p61 = por %p59, %p60
      %p63 = scmp.ne.s32.totalorder %s48, %s62
      %p64 = scmp.eq.s32.totalorder %s17, 0
      %p65 = por %p63, %p64
      %s66 = ssub.s32 %s11, %s18
      %p67 = scmp.eq.s32.totalorder %s66, 0
      %s69 = sadd.s32 %s68, 1
      %s70 = scalar_select %p67, %s68, %s69
      %p73 = pneg %p67
      %p74 = scmp.eq.s32.totalorder %s11, 2
      %p75 = por %p73, %p74
      %p76 = scmp.ne.s32.totalorder %s68, %s71
      %p77 = scmp.eq.s32.totalorder %s11, 0
      %p78 = por %p76, %p77
      %p79 = scmp.ne.s32.totalorder %s68, %s71
      %p80 = scmp.eq.s32.totalorder %s16, 2
      %p81 = por %p79, %p80
      %p82 = scmp.ne.s32.totalorder %s71, %s72
      %p83 = scmp.eq.s32.totalorder %s16, 0
      %p84 = por %p82, %p83
      %p85 = scmp.ne.s32.totalorder %s71, %s72
      %p86 = scmp.eq.s32.totalorder %s17, 2
      %p87 = por %p85, %p86
      %p89 = scmp.ne.s32.totalorder %s72, %s88
      %p90 = scmp.eq.s32.totalorder %s17, 0
      %p91 = por %p89, %p90
      %p92 = scmp.le.s32.totalorder 1, %s11
      %p93 = scmp.lt.s32.totalorder %s11, 4
      %p94 = pnand %p92, %p93
      %p95 = pneg %p94
      // Predicated region
      $region9: #{tpu_custom_call.1} parent=5 // pred_check
        _
      $region10: #{tpu_custom_call.1} parent=5 // pred_check_branch
        %97 = sbr.rel (%p94) target = $region12
      $region11: #{tpu_custom_call.1} parent=5 // pred_region
        %s98 = ssub.s32 %s11, 1
        // Predicated region
        $region13: #{tpu_custom_call.1} parent=11 // pred_check
          %p99 = pneg %p58
        $region14: #{tpu_custom_call.1} parent=11 // pred_check_branch
          %101 = sbr.rel (%p99) target = $region16
        $region15: #{tpu_custom_call.1} parent=11 // pred_region
          _
        $region16: #{tpu_custom_call.1} parent=11 // pred_fallthru
          _
      $region12: #{tpu_custom_call.1} parent=5 // pred_fallthru
        _
      %p102 = scmp.lt.s32.totalorder %s11, 3
      // Predicated region
      $region17: #{tpu_custom_call.1} parent=5 // pred_check
        %p103 = pneg %p102
      $region18: #{tpu_custom_call.1} parent=5 // pred_check_branch
        %105 = sbr.rel (%p103) target = $region20
      $region19: #{tpu_custom_call.1} parent=5 // pred_region
        // Predicated region
        $region21: #{tpu_custom_call.1} parent=19 // pred_check
          %p106 = pneg %p31
        $region22: #{tpu_custom_call.1} parent=19 // pred_check_branch
          %108 = sbr.rel (%p106) target = $region24
        $region23: #{tpu_custom_call.1} parent=19 // pred_region
          %s109 = smul.u32 16, %s11
          %p110 = scmp.lt.s32.totalorder %s109, 47
          %s111 = scalar_select %p110, %s109, 47
          %s112 = smul.addr %s111, 4
          %s113 = scalar_lea.vmem %s0, %s112
          %s114 = smul.u32 16, %s11
        $region24: #{tpu_custom_call.1} parent=19 // pred_fallthru
          _
      $region20: #{tpu_custom_call.1} parent=5 // pred_fallthru
        _
      %p115 = scmp.le.s32.totalorder 1, %s11
      %p116 = scmp.lt.s32.totalorder %s11, 4
      %p117 = pnand %p115, %p116
      %p118 = pneg %p117
      // Predicated region
      $region25: #{tpu_custom_call.1} parent=5 // pred_check
        _
      $region26: #{tpu_custom_call.1} parent=5 // pred_check_branch
        %120 = sbr.rel (%p117) target = $region28
      $region27: #{tpu_custom_call.1} parent=5 // pred_region
        %s121 = ssub.s32 %s11, 1
        %s122 = smul.u32 16, %s16
        %p123 = scmp.lt.s32.totalorder %s122, 47
        %s124 = scalar_select %p123, %s122, 47
        %s125 = smul.addr %s124, 4
        %s126 = scalar_lea.vmem %s0, %s125
        %p127 = pneg %p37
        %p128 = pneg %p34
        %p129 = pneg %p58
        %p130 = pneg %p55
        %p131 = pneg %p84
        %p132 = pneg %p81
        %s133 = sand.u32 %s71, 1
        %s134 = scalar_lea.sflag [#allocation3], %s133
        %s135 = sand.u32 %s71, 1
        %s136 = smul.addr %s135, 64
        %s137 = scalar_lea.vmem [#allocation2], %s136
        %s138 = smul.u32 16, %s16
        %p139 = scmp.lt.s32.totalorder %s138, 47
        %s140 = scalar_select %p139, %s138, 47
        %s141 = smul.addr %s140, 4
        %s142 = scalar_lea.vmem %s0, %s141
        %s143 = smul.u32 16, %s16
        %s144 = smul.u32 16, %s16
        %v146 = vld [vmem:[%s142] sm:$0xf]
        %v147 = vld [vmem:[%s142 + $0x4] sm:$0xf]
        %v148 = vld [vmem:[%s142 + $0x8] sm:$0xf]
        %v149 = vld [vmem:[%s142 + $0xc] sm:$0xf]
        %v150 = vld [vmem:[%s142 + $0x10] sm:$0xf]
        %v151 = vld [vmem:[%s142 + $0x14] sm:$0xf]
        %v152 = vld [vmem:[%s142 + $0x18] sm:$0xf]
        %v153 = vld [vmem:[%s142 + $0x1c] sm:$0xf]
        %v154 = vld [vmem:[%s142 + $0x20] sm:$0xf]
        %v155 = vld [vmem:[%s142 + $0x24] sm:$0xf]
        %v156 = vld [vmem:[%s142 + $0x28] sm:$0xf]
        %v157 = vld [vmem:[%s142 + $0x2c] sm:$0xf]
        %v158 = vld [vmem:[%s142 + $0x30] sm:$0xf]
        %v159 = vld [vmem:[%s142 + $0x34] sm:$0xf]
        %v160 = vld [vmem:[%s142 + $0x38] sm:$0xf]
        %v161 = vld [vmem:[%s142 + $0x3c] sm:$0xf]
        %v162 = vld [vmem:[%s1] sm:$0xf]
        %v163 = vld [vmem:[%s1 + $0x4] sm:$0xf]
        %v164 = vld [vmem:[%s1 + $0x8] sm:$0xf]
        %v165 = vld [vmem:[%s1 + $0xc] sm:$0xf]
        %v166 = vld [vmem:[%s1 + $0x10] sm:$0xf]
        %v167 = vld [vmem:[%s1 + $0x14] sm:$0xf]
        %v168 = vld [vmem:[%s1 + $0x18] sm:$0xf]
        %v169 = vld [vmem:[%s1 + $0x1c] sm:$0xf]
        %v186 = vunpack.c.l.b16 %v146
        %v187 = vunpack.c.l.b16 %v147
        %v188 = vunpack.c.l.b16 %v148
        %v189 = vunpack.c.l.b16 %v149
        %v190 = vunpack.c.l.b16 %v150
        %v191 = vunpack.c.l.b16 %v151
        %v192 = vunpack.c.l.b16 %v152
        %v193 = vunpack.c.l.b16 %v153
        %v194 = vunpack.c.l.b16 %v154
        %v195 = vunpack.c.l.b16 %v155
        %v196 = vunpack.c.l.b16 %v156
        %v197 = vunpack.c.l.b16 %v157
        %v198 = vunpack.c.l.b16 %v158
        %v199 = vunpack.c.l.b16 %v159
        %v200 = vunpack.c.l.b16 %v160
        %v201 = vunpack.c.l.b16 %v161
        %v202 = vpack.c.b16 %v187, %v186
        %v203 = vpack.c.b16 %v189, %v188
        %v204 = vpack.c.b16 %v191, %v190
        %v205 = vpack.c.b16 %v193, %v192
        %v206 = vpack.c.b16 %v195, %v194
        %v207 = vpack.c.b16 %v197, %v196
        %v208 = vpack.c.b16 %v199, %v198
        %v209 = vpack.c.b16 %v201, %v200
        %v218 = vunpack.c.l.b16 %v162
        %v219 = vunpack.c.l.b16 %v163
        %v220 = vunpack.c.l.b16 %v164
        %v221 = vunpack.c.l.b16 %v165
        %v222 = vunpack.c.l.b16 %v166
        %v223 = vunpack.c.l.b16 %v167
        %v224 = vunpack.c.l.b16 %v168
        %v225 = vunpack.c.l.b16 %v169
        %v226 = vpack.c.b16 %v219, %v218
        %v227 = vpack.c.b16 %v221, %v220
        %v228 = vpack.c.b16 %v223, %v222
        %v229 = vpack.c.b16 %v225, %v224
        %vm234 = vcmask 523264
        %v236 = vsel %vm234, %v202, 0
        %v239 = vsel %vm234, %v203, 0
        %v242 = vsel %vm234, %v204, 0
        %v245 = vsel %vm234, %v205, 0
        %v248 = vsel %vm234, %v206, 0
        %v251 = vsel %vm234, %v207, 0
        %v254 = vsel %vm234, %v208, 0
        %v257 = vsel %vm234, %v209, 0
        %259 = vmatpush.bf16.msra.mxu0 0
        %260 = vmatpush.bf16.msra.mxu0 0
        %261 = vmatpush.bf16.msra.mxu0 0
        %262 = vmatpush.bf16.msra.mxu0 0
        %263 = vmatpush.bf16.msra.mxu0 %v229
        %264 = vmatpush.bf16.msra.mxu0 %v228
        %265 = vmatpush.bf16.msra.mxu0 %v227
        %266 = vmatpush.bf16.msra.mxu0 %v226
        %267 = vmatmul.bf16.gmra.mxu0 %v236
        %v268 = vpop.f32.mrf.mxu0
        %v269 = vadd.f32 0.0, %v268
        %v270 = vpop.f32.mrf.mxu0
        %v271 = vadd.f32 0.0, %v270
        %272 = vmatmul.bf16.gmra.mxu0 %v239
        %v273 = vpop.f32.mrf.mxu0
        %v274 = vadd.f32 0.0, %v273
        %v275 = vpop.f32.mrf.mxu0
        %v276 = vadd.f32 0.0, %v275
        %277 = vmatmul.bf16.gmra.mxu0 %v242
        %v278 = vpop.f32.mrf.mxu0
        %v279 = vadd.f32 0.0, %v278
        %v280 = vpop.f32.mrf.mxu0
        %v281 = vadd.f32 0.0, %v280
        %282 = vmatmul.bf16.gmra.mxu0 %v245
        %v283 = vpop.f32.mrf.mxu0
        %v284 = vadd.f32 0.0, %v283
        %v285 = vpop.f32.mrf.mxu0
        %v286 = vadd.f32 0.0, %v285
        %287 = vmatmul.bf16.gmra.mxu0 %v248
        %v288 = vpop.f32.mrf.mxu0
        %v289 = vadd.f32 0.0, %v288
        %v290 = vpop.f32.mrf.mxu0
        %v291 = vadd.f32 0.0, %v290
        %292 = vmatmul.bf16.gmra.mxu0 %v251
        %v293 = vpop.f32.mrf.mxu0
        %v294 = vadd.f32 0.0, %v293
        %v295 = vpop.f32.mrf.mxu0
        %v296 = vadd.f32 0.0, %v295
        %297 = vmatmul.bf16.gmra.mxu0 %v254
        %v298 = vpop.f32.mrf.mxu0
        %v299 = vadd.f32 0.0, %v298
        %v300 = vpop.f32.mrf.mxu0
        %v301 = vadd.f32 0.0, %v300
        %302 = vmatmul.bf16.gmra.mxu0 %v257
        %v303 = vpop.f32.mrf.mxu0
        %v304 = vadd.f32 0.0, %v303
        %v305 = vpop.f32.mrf.mxu0
        %v306 = vadd.f32 0.0, %v305
        %307 = vdwg.mxu0
        %v308 = vpack.c.bf16 %v269, %v269
        %v309 = vpack.c.bf16 %v271, %v271
        %v310 = vpack.c.bf16 %v274, %v274
        %v311 = vpack.c.bf16 %v276, %v276
        %v312 = vpack.c.bf16 %v279, %v279
        %v313 = vpack.c.bf16 %v281, %v281
        %v314 = vpack.c.bf16 %v284, %v284
        %v315 = vpack.c.bf16 %v286, %v286
        %v316 = vpack.c.bf16 %v289, %v289
        %v317 = vpack.c.bf16 %v291, %v291
        %v318 = vpack.c.bf16 %v294, %v294
        %v319 = vpack.c.bf16 %v296, %v296
        %v320 = vpack.c.bf16 %v299, %v299
        %v321 = vpack.c.bf16 %v301, %v301
        %v322 = vpack.c.bf16 %v304, %v304
        %v323 = vpack.c.bf16 %v306, %v306
        %324 = vst [vmem:[%s137] sm:$0xf] %v308
        %325 = vst [vmem:[%s137 + $0x4] sm:$0xf] %v309
        %326 = vst [vmem:[%s137 + $0x8] sm:$0xf] %v310
        %327 = vst [vmem:[%s137 + $0xc] sm:$0xf] %v311
        %328 = vst [vmem:[%s137 + $0x10] sm:$0xf] %v312
        %329 = vst [vmem:[%s137 + $0x14] sm:$0xf] %v313
        %330 = vst [vmem:[%s137 + $0x18] sm:$0xf] %v314
        %331 = vst [vmem:[%s137 + $0x1c] sm:$0xf] %v315
        %332 = vst [vmem:[%s137 + $0x20] sm:$0xf] %v316
        %333 = vst [vmem:[%s137 + $0x24] sm:$0xf] %v317
        %334 = vst [vmem:[%s137 + $0x28] sm:$0xf] %v318
        %335 = vst [vmem:[%s137 + $0x2c] sm:$0xf] %v319
        %336 = vst [vmem:[%s137 + $0x30] sm:$0xf] %v320
        %337 = vst [vmem:[%s137 + $0x34] sm:$0xf] %v321
        %338 = vst [vmem:[%s137 + $0x38] sm:$0xf] %v322
        %339 = vst [vmem:[%s137 + $0x3c] sm:$0xf] %v323
        %s340 = sand.u32 %s71, 1
        %s341 = scalar_lea.sflag [#allocation3], %s340
        %s342 = sand.u32 %s71, 1
        %s343 = smul.addr %s342, 64
        %s344 = scalar_lea.vmem [#allocation2], %s343
        // Predicated region
        $region29: #{tpu_custom_call.1} parent=27 // pred_check
          %p345 = pneg %p81
        $region30: #{tpu_custom_call.1} parent=27 // pred_check_branch
          %347 = sbr.rel (%p345) target = $region32
        $region31: #{tpu_custom_call.1} parent=27 // pred_region
          %s348 = smul.u32 16, %s16
          %350 = vsyncadd %s341, 0
          %s351 = smul.addr %s348, 4
          %s352 = scalar_lea.hbm %s2, %s351
          %s353 = sshll.u32 %s344, 4
          %s354 = int_to_ptr.vmem [resolvable:$true] %s353
          %s355 = sshll.u32 %s352, 4
          %s356 = int_to_ptr.hbm [resolvable:$true] %s355
          %361 = dma.vmem_to_hbm [thread:$0]  %s354, 1024, %s356, %s341, 64, 64, 4
        $region32: #{tpu_custom_call.1} parent=27 // pred_fallthru
          _
      $region28: #{tpu_custom_call.1} parent=5 // pred_fallthru
        _
      %p362 = scmp.le.s32.totalorder 2, %s11
      // Predicated region
      $region33: #{tpu_custom_call.1} parent=5 // pred_check
        %p363 = pneg %p362
      $region34: #{tpu_custom_call.1} parent=5 // pred_check_branch
        %365 = sbr.rel (%p363) target = $region36
      $region35: #{tpu_custom_call.1} parent=5 // pred_region
        %s366 = ssub.s32 %s11, 2
        // Predicated region
        $region37: #{tpu_custom_call.1} parent=35 // pred_check
          %p367 = pneg %p87
        $region38: #{tpu_custom_call.1} parent=35 // pred_check_branch
          %369 = sbr.rel (%p367) target = $region40
        $region39: #{tpu_custom_call.1} parent=35 // pred_region
          %s370 = sand.u32 %s72, 1
          %s371 = scalar_lea.sflag [#allocation3], %s370
          %s372 = sand.u32 %s72, 1
          %s373 = smul.addr %s372, 64
          %s374 = scalar_lea.vmem [#allocation2], %s373
          %376 = dma.done %s371, 1024
        $region40: #{tpu_custom_call.1} parent=35 // pred_fallthru
          _
      $region36: #{tpu_custom_call.1} parent=5 // pred_fallthru
        _
    $region6: #{tpu_custom_call.1} parent=1 // loop_footer
      %s15 = sadd.s32 1, %s11
    $region7: #{tpu_custom_call.1} parent=1 // loop_footer_branch
      %10 = sbr.rel target = $region3
    $region8: #{tpu_custom_call.1} parent=1 // loop_exit
      _
    %377 = vsyncpa [#allocation3], 1
    %s378 = scalar_lea.sflag [#allocation3], 1
    %379 = vsyncpa %s378, 1

</llo_original>
